<compile_context>
chip_gen: v7x
topology: tpu7x:2x2x1
jax: 0.10.0
libtpu: 0.0.40
codegen_flags: <defaults>
</compile_context>

<pallas_src>
import functools

import jax
import jax.numpy as jnp
from jax.experimental import pallas as pl
from jax.experimental.pallas import tpu as pltpu

INPUT_SIZE = 63
HIDDEN1 = 256
HIDDEN2 = 128
NUM_CLASSES = 5

IN_PAD = 128    # 63 -> 128 (lane-dense x loads, explicit/free MXU K-padding)
OUT_PAD = 128   # 5  -> 128 (lane-dense output stores; padded cols are zero)
TB_MAX = 512    # batch tile (rows); intermediates stay modest, pipeline-friendly


def _round_up(x, m):
    return ((x + m - 1) // m) * m


def _mlp_kernel(x_ref, w1_ref, b1_ref, w2_ref, b2_ref, w3_ref, b3_ref, o_ref):
    """One batch tile: (TB, 128) -> (TB, 128) padded logits.

    Weights may be bf16 (matmul inputs are cast to the weight dtype); all
    accumulation and the bias/ReLU epilogues stay in f32 (v5e VPU has no bf16).
    """
    wdt = w1_ref.dtype
    # Layer 1: (TB, 128) @ (128, 256) + (1, 256) -> ReLU.  Dropout: identity.
    h1 = jnp.dot(x_ref[...].astype(wdt), w1_ref[...],
                 preferred_element_type=jnp.float32)
    h1 = jnp.maximum(h1 + b1_ref[...], 0.0)
    # Layer 2: (TB, 256) @ (256, 128) + (1, 128) -> ReLU.  Dropout: identity.
    h2 = jnp.dot(h1.astype(wdt), w2_ref[...],
                 preferred_element_type=jnp.float32)
    h2 = jnp.maximum(h2 + b2_ref[...], 0.0)
    # Layer 3: (TB, 128) @ (128, 128) + (1, 128).  Columns >= 5 are zero.
    logits = jnp.dot(h2.astype(wdt), w3_ref[...],
                     preferred_element_type=jnp.float32)
    o_ref[...] = (logits + b3_ref[...]).astype(o_ref.dtype)


@functools.partial(jax.jit, static_argnames=("weights_dtype", "tb_max"))
def static_gesture_forward(x, params, *, weights_dtype=jnp.float32,
                           tb_max=TB_MAX):
    """x: (B, 63) float32. Returns (B, NUM_CLASSES) float32 logits."""
    w1, b1, w2, b2, w3, b3 = params
    B, in_features = x.shape
    assert in_features == INPUT_SIZE

    # --- lane-dense padding (zeros so the math is unchanged) ----------------
    x_p = jnp.pad(x, ((0, 0), (0, IN_PAD - INPUT_SIZE)))
    w1_p = jnp.pad(w1, ((0, IN_PAD - INPUT_SIZE), (0, 0))).astype(weights_dtype)
    w2_p = w2.astype(weights_dtype)
    w3_p = jnp.pad(w3, ((0, 0), (0, OUT_PAD - NUM_CLASSES))).astype(weights_dtype)
    b3_p = jnp.pad(b3, ((0, 0), (0, OUT_PAD - NUM_CLASSES)))  # bias stays f32

    # --- batch tiling --------------------------------------------------------
    TB = min(tb_max, _round_up(B, 8))           # >= 8 sublanes, <= tb_max rows
    B_pad = _round_up(B, TB)
    if B_pad != B:
        x_p = jnp.pad(x_p, ((0, B_pad - B), (0, 0)))
    grid = (B_pad // TB,)

    # Weights/biases: constant index_map -> resident in VMEM across the grid.
    w_spec = lambda shape: pl.BlockSpec(shape, lambda i: (0, 0))

    flops = 2 * B_pad * (IN_PAD * HIDDEN1 + HIDDEN1 * HIDDEN2 + HIDDEN2 * OUT_PAD)
    bytes_accessed = (
        x_p.size * x_p.dtype.itemsize
        + B_pad * OUT_PAD * 4
        + sum(a.size * a.dtype.itemsize
              for a in (w1_p, b1, w2_p, b2, w3_p, b3_p)))

    out_padded = pl.pallas_call(
        _mlp_kernel,
        out_shape=jax.ShapeDtypeStruct((B_pad, OUT_PAD), jnp.float32),
        grid=grid,
        in_specs=[
            pl.BlockSpec((TB, IN_PAD), lambda i: (i, 0)),      # x tile
            w_spec((IN_PAD, HIDDEN1)),                         # w1
            w_spec((1, HIDDEN1)),                              # b1
            w_spec((HIDDEN1, HIDDEN2)),                        # w2
            w_spec((1, HIDDEN2)),                              # b2
            w_spec((HIDDEN2, OUT_PAD)),                        # w3 (padded)
            w_spec((1, OUT_PAD)),                              # b3 (padded)
        ],
        out_specs=pl.BlockSpec((TB, OUT_PAD), lambda i: (i, 0)),
        compiler_params=pltpu.CompilerParams(
            dimension_semantics=("parallel",)),                # v7x megacore
        cost_estimate=pl.CostEstimate(
            flops=flops, transcendentals=0, bytes_accessed=bytes_accessed),
    )(x_p, w1_p, b1, w2_p, b2, w3_p, b3_p)

    # Strip batch padding and the zero logit columns.
    return out_padded[:B, :NUM_CLASSES]


def init_params(key):
    """Deterministic init mirroring the PyTorch Linear shapes.

    PyTorch nn.Linear stores weight as (out, in); we store the transpose
    (in, out) so the kernel does x @ W directly. Kaiming-uniform-ish scaling.
    """
    ks = jax.random.split(key, 6)

    def linear(kw, kb, fan_in, fan_out):
        bound = 1.0 / jnp.sqrt(jnp.float32(fan_in))
        w = jax.random.uniform(kw, (fan_in, fan_out), jnp.float32, -bound, bound)
        b = jax.random.uniform(kb, (1, fan_out), jnp.float32, -bound, bound)
        return w, b

    w1, b1 = linear(ks[0], ks[1], INPUT_SIZE, HIDDEN1)
    w2, b2 = linear(ks[2], ks[3], HIDDEN1, HIDDEN2)
    w3, b3 = linear(ks[4], ks[5], HIDDEN2, NUM_CLASSES)
    return (w1, b1, w2, b2, w3, b3)


def reference_forward(x, params):
    w1, b1, w2, b2, w3, b3 = params
    h1 = jnp.maximum(x @ w1 + b1, 0.0)
    h2 = jnp.maximum(h1 @ w2 + b2, 0.0)
    return h2 @ w3 + b3


if __name__ == "__main__":
    key = jax.random.PRNGKey(0)
    k_params, k_x, k_x2 = jax.random.split(key, 3)

    params = init_params(k_params)

    # Small batch (single grid step), f32 weights: tight tolerance.
    x = jax.random.normal(k_x, (8, INPUT_SIZE), dtype=jnp.float32)
    out = jax.block_until_ready(static_gesture_forward(x, params))
    ref = reference_forward(x, params)
    assert out.shape == (8, NUM_CLASSES)
    assert jnp.allclose(out, ref, atol=1e-4, rtol=1e-4), "f32 mismatch vs reference"

    # Larger, non-multiple batch exercising the batch grid + padding slice.
    x2 = jax.random.normal(k_x2, (272, INPUT_SIZE), dtype=jnp.float32)
    out2 = jax.block_until_ready(
        static_gesture_forward(x2, params, tb_max=128))   # grid=(3,), padded rows
    ref2 = reference_forward(x2, params)
    assert out2.shape == (272, NUM_CLASSES)
    assert jnp.allclose(out2, ref2, atol=1e-4, rtol=1e-4), "gridded mismatch"

    # bf16-weight path (v6e/v7x HBM/VMEM saving), f32 accumulation: loose tol.
    out_bf16 = jax.block_until_ready(
        static_gesture_forward(x, params, weights_dtype=jnp.bfloat16))
    assert jnp.allclose(out_bf16, ref, atol=5e-2, rtol=5e-2), "bf16 mismatch"

    print("KERNEL_OK")
</pallas_src>

<mosaic_0001>
module attributes {stable_mosaic.version = 11 : i64} {
  func.func @_mlp_kernel(%arg0: i32, %arg1: memref<8x128xf32, #tpu.memory_space<vmem>>, %arg2: memref<128x256xf32, #tpu.memory_space<vmem>>, %arg3: memref<1x256xf32, #tpu.memory_space<vmem>>, %arg4: memref<256x128xf32, #tpu.memory_space<vmem>>, %arg5: memref<1x128xf32, #tpu.memory_space<vmem>>, %arg6: memref<128x128xf32, #tpu.memory_space<vmem>>, %arg7: memref<1x128xf32, #tpu.memory_space<vmem>>, %arg8: memref<8x128xf32, #tpu.memory_space<vmem>>) attributes {dimension_semantics = [#tpu.dimension_semantics<parallel>], iteration_bounds = array<i64: 1>, scalar_prefetch = 0 : i64, scratch_operands = 0 : i64, tpu.core_type = #tpu.core_type<tc>, window_params = [{transform_indices = @transform_0, window_bounds = array<i64: 8, 128>}, {pipeline_mode = #tpu.pipeline_mode<synchronous>, transform_indices = @transform_1, window_bounds = array<i64: 128, 256>}, {pipeline_mode = #tpu.pipeline_mode<synchronous>, transform_indices = @transform_2, window_bounds = array<i64: 1, 256>}, {pipeline_mode = #tpu.pipeline_mode<synchronous>, transform_indices = @transform_3, window_bounds = array<i64: 256, 128>}, {pipeline_mode = #tpu.pipeline_mode<synchronous>, transform_indices = @transform_4, window_bounds = array<i64: 1, 128>}, {pipeline_mode = #tpu.pipeline_mode<synchronous>, transform_indices = @transform_5, window_bounds = array<i64: 128, 128>}, {pipeline_mode = #tpu.pipeline_mode<synchronous>, transform_indices = @transform_6, window_bounds = array<i64: 1, 128>}, {transform_indices = @transform_7, window_bounds = array<i64: 8, 128>}]} {
    %c0 = arith.constant 0 : index
    %c0_0 = arith.constant 0 : index
    %0 = vector.load %arg1[%c0, %c0_0] : memref<8x128xf32, #tpu.memory_space<vmem>>, vector<8x128xf32>
    %c0_1 = arith.constant 0 : index
    %c0_2 = arith.constant 0 : index
    %1 = vector.load %arg2[%c0_1, %c0_2] : memref<128x256xf32, #tpu.memory_space<vmem>>, vector<128x256xf32>
    %cst = arith.constant dense<0.000000e+00> : vector<8x256xf32>
    %2 = tpu.matmul %0, %1, %cst {dimension_numbers = #tpu.dot_dimension_numbers<[1], [0], [0], [1], [0, 0, 1, 1], [], []>} : vector<8x128xf32>, vector<128x256xf32>, vector<8x256xf32> -> vector<8x256xf32>
    %c0_3 = arith.constant 0 : index
    %c0_4 = arith.constant 0 : index
    %3 = vector.load %arg3[%c0_3, %c0_4] : memref<1x256xf32, #tpu.memory_space<vmem>>, vector<1x256xf32>
    %4 = vector.broadcast %3 : vector<1x256xf32> to vector<8x256xf32>
    %5 = arith.addf %2, %4 : vector<8x256xf32>
    %cst_5 = arith.constant 0.000000e+00 : f32
    %6 = vector.broadcast %cst_5 : f32 to vector<8x256xf32>
    %7 = arith.maximumf %5, %6 : vector<8x256xf32>
    %c0_6 = arith.constant 0 : index
    %c0_7 = arith.constant 0 : index
    %8 = vector.load %arg4[%c0_6, %c0_7] : memref<256x128xf32, #tpu.memory_space<vmem>>, vector<256x128xf32>
    %cst_8 = arith.constant dense<0.000000e+00> : vector<8x128xf32>
    %9 = tpu.matmul %7, %8, %cst_8 {dimension_numbers = #tpu.dot_dimension_numbers<[1], [0], [0], [1], [0, 0, 1, 1], [], []>} : vector<8x256xf32>, vector<256x128xf32>, vector<8x128xf32> -> vector<8x128xf32>
    %c0_9 = arith.constant 0 : index
    %c0_10 = arith.constant 0 : index
    %10 = vector.load %arg5[%c0_9, %c0_10] : memref<1x128xf32, #tpu.memory_space<vmem>>, vector<1x128xf32>
    %11 = vector.broadcast %10 : vector<1x128xf32> to vector<8x128xf32>
    %12 = arith.addf %9, %11 : vector<8x128xf32>
    %cst_11 = arith.constant 0.000000e+00 : f32
    %13 = vector.broadcast %cst_11 : f32 to vector<8x128xf32>
    %14 = arith.maximumf %12, %13 : vector<8x128xf32>
    %c0_12 = arith.constant 0 : index
    %c0_13 = arith.constant 0 : index
    %15 = vector.load %arg6[%c0_12, %c0_13] : memref<128x128xf32, #tpu.memory_space<vmem>>, vector<128x128xf32>
    %cst_14 = arith.constant dense<0.000000e+00> : vector<8x128xf32>
    %16 = tpu.matmul %14, %15, %cst_14 {dimension_numbers = #tpu.dot_dimension_numbers<[1], [0], [0], [1], [0, 0, 1, 1], [], []>} : vector<8x128xf32>, vector<128x128xf32>, vector<8x128xf32> -> vector<8x128xf32>
    %c0_15 = arith.constant 0 : index
    %c0_16 = arith.constant 0 : index
    %17 = vector.load %arg7[%c0_15, %c0_16] : memref<1x128xf32, #tpu.memory_space<vmem>>, vector<1x128xf32>
    %18 = vector.broadcast %17 : vector<1x128xf32> to vector<8x128xf32>
    %19 = arith.addf %16, %18 : vector<8x128xf32>
    %c0_17 = arith.constant 0 : index
    %c0_18 = arith.constant 0 : index
    %20 = vector.load %arg8[%c0_17, %c0_18] : memref<8x128xf32, #tpu.memory_space<vmem>>, vector<8x128xf32>
    tpu.vector_store %arg8[%c0_17, %c0_18], %19 {strides = array<i32>} : memref<8x128xf32, #tpu.memory_space<vmem>>, vector<8x128xf32>,
    return
  }
  func.func @transform_0(%arg0: i32) -> (i32, i32) {
    %c0_i32 = arith.constant 0 : i32
    %c0_i32_0 = arith.constant 0 : i32
    return %arg0, %c0_i32 : i32, i32
  }
  func.func @transform_1(%arg0: i32) -> (i32, i32) {
    %c0_i32 = arith.constant 0 : i32
    %c0_i32_0 = arith.constant 0 : i32
    %c0_i32_1 = arith.constant 0 : i32
    return %c0_i32, %c0_i32_0 : i32, i32
  }
  func.func @transform_2(%arg0: i32) -> (i32, i32) {
    %c0_i32 = arith.constant 0 : i32
    %c0_i32_0 = arith.constant 0 : i32
    %c0_i32_1 = arith.constant 0 : i32
    return %c0_i32, %c0_i32_0 : i32, i32
  }
  func.func @transform_3(%arg0: i32) -> (i32, i32) {
    %c0_i32 = arith.constant 0 : i32
    %c0_i32_0 = arith.constant 0 : i32
    %c0_i32_1 = arith.constant 0 : i32
    return %c0_i32, %c0_i32_0 : i32, i32
  }
  func.func @transform_4(%arg0: i32) -> (i32, i32) {
    %c0_i32 = arith.constant 0 : i32
    %c0_i32_0 = arith.constant 0 : i32
    %c0_i32_1 = arith.constant 0 : i32
    return %c0_i32, %c0_i32_0 : i32, i32
  }
  func.func @transform_5(%arg0: i32) -> (i32, i32) {
    %c0_i32 = arith.constant 0 : i32
    %c0_i32_0 = arith.constant 0 : i32
    %c0_i32_1 = arith.constant 0 : i32
    return %c0_i32, %c0_i32_0 : i32, i32
  }
  func.func @transform_6(%arg0: i32) -> (i32, i32) {
    %c0_i32 = arith.constant 0 : i32
    %c0_i32_0 = arith.constant 0 : i32
    %c0_i32_1 = arith.constant 0 : i32
    return %c0_i32, %c0_i32_0 : i32, i32
  }
  func.func @transform_7(%arg0: i32) -> (i32, i32) {
    %c0_i32 = arith.constant 0 : i32
    %c0_i32_0 = arith.constant 0 : i32
    return %arg0, %c0_i32 : i32, i32
  }
}

</mosaic_0001>

<llo_original>
// kernel: static_gesture_forward.1
$region0: #{static_gesture_forward.1}
  #allocation0 [shape = 'u32[]', space=smem, size = 0x4, offset = 0x4, fixed_abs, tag = 'smem constant byte address 0x4 - core index']
  #allocation1 [shape = 'u32[144,128]{1,0:T(1,128)}', space=vmem, size = 0x12000, scoped, tag = 'internal scratch']
  %s0 = inlined_call_operand.vmem [shape: f32[8,128], index: 0, kind: input, shape index: {}]
  %s1 = inlined_call_operand.vmem [shape: f32[128,256], index: 1, kind: input, shape index: {}]
  %s2 = inlined_call_operand.vmem [shape: f32[1,256], index: 2, kind: input, shape index: {}]
  %s3 = inlined_call_operand.vmem [shape: f32[256,128], index: 3, kind: input, shape index: {}]
  %s4 = inlined_call_operand.vmem [shape: f32[1,128], index: 4, kind: input, shape index: {}]
  %s5 = inlined_call_operand.vmem [shape: f32[128,128], index: 5, kind: input, shape index: {}]
  %s6 = inlined_call_operand.vmem [shape: f32[1,128], index: 6, kind: input, shape index: {}]
  %s7 = inlined_call_operand.hbm [shape: f32[8,128], index: 7, kind: output, shape index: {}]
  %s8 = sld [smem:[#allocation0]]
  $region38: #{static_gesture_forward.1} parent=0
    _
  %s10 = ssub.s32 1, %s8
  %s11 = scalar_select 0, %s10, %s8
  $region1: #{static_gesture_forward.1} parent=0
    #allocation2 [shape = 'u8[4096]{0}', space=vmem, size = 0x1000, scoped, tag = 'output window, operand 0, single buffered']
    #allocation3 [shape = 's32[1]{0}', space=sflag, size = 0x4, scoped, tag = 'scoped memory for static_gesture_forward.1']
    %12 = vsyncpa [#allocation3], 0
    // Predicated region
    $region2: #{static_gesture_forward.1} parent=1 // pred_check
      _
    $region3: #{static_gesture_forward.1} parent=1 // pred_check_branch
      %14 = sbr.rel (0) target = $region5
    $region4: #{static_gesture_forward.1} parent=1 // pred_region
      _
    $region5: #{static_gesture_forward.1} parent=1 // pred_fallthru
      _
    // Predicated region
    $region6: #{static_gesture_forward.1} parent=1 // pred_check
      _
    $region7: #{static_gesture_forward.1} parent=1 // pred_check_branch
      %16 = sbr.rel (0) target = $region9
    $region8: #{static_gesture_forward.1} parent=1 // pred_region
      _
    $region9: #{static_gesture_forward.1} parent=1 // pred_fallthru
      _
    // Predicated region
    $region10: #{static_gesture_forward.1} parent=1 // pred_check
      _
    $region11: #{static_gesture_forward.1} parent=1 // pred_check_branch
      %18 = sbr.rel (0) target = $region13
    $region12: #{static_gesture_forward.1} parent=1 // pred_region
      _
    $region13: #{static_gesture_forward.1} parent=1 // pred_fallthru
      _
    // Predicated region
    $region14: #{static_gesture_forward.1} parent=1 // pred_check
      _
    $region15: #{static_gesture_forward.1} parent=1 // pred_check_branch
      %20 = sbr.rel (0) target = $region17
    $region16: #{static_gesture_forward.1} parent=1 // pred_region
      _
    $region17: #{static_gesture_forward.1} parent=1 // pred_fallthru
      _
    // Predicated region
    $region18: #{static_gesture_forward.1} parent=1 // pred_check
      _
    $region19: #{static_gesture_forward.1} parent=1 // pred_check_branch
      %22 = sbr.rel (0) target = $region21
    $region20: #{static_gesture_forward.1} parent=1 // pred_region
      _
    $region21: #{static_gesture_forward.1} parent=1 // pred_fallthru
      _
    // Predicated region
    $region22: #{static_gesture_forward.1} parent=1 // pred_check
      _
    $region23: #{static_gesture_forward.1} parent=1 // pred_check_branch
      %24 = sbr.rel (0) target = $region25
    $region24: #{static_gesture_forward.1} parent=1 // pred_region
      _
    $region25: #{static_gesture_forward.1} parent=1 // pred_fallthru
      _
    // Predicated region
    $region26: #{static_gesture_forward.1} parent=1 // pred_check
      _
    $region27: #{static_gesture_forward.1} parent=1 // pred_check_branch
      %26 = sbr.rel (0) target = $region29
    $region28: #{static_gesture_forward.1} parent=1 // pred_region
      _
    $region29: #{static_gesture_forward.1} parent=1 // pred_fallthru
      _
    %v27 = vld [vmem:[%s0] sm:$0xff]
    %v28 = vld [vmem:[%s1] sm:$0xff]
    %v29 = vld [vmem:[%s1 + $0x8] sm:$0xff]
    %v30 = vld [vmem:[%s1 + $0x10] sm:$0xff]
    %v31 = vld [vmem:[%s1 + $0x18] sm:$0xff]
    %v32 = vld [vmem:[%s1 + $0x20] sm:$0xff]
    %v33 = vld [vmem:[%s1 + $0x28] sm:$0xff]
    %v34 = vld [vmem:[%s1 + $0x30] sm:$0xff]
    %v35 = vld [vmem:[%s1 + $0x38] sm:$0xff]
    %v36 = vld [vmem:[%s1 + $0x40] sm:$0xff]
    %v37 = vld [vmem:[%s1 + $0x48] sm:$0xff]
    %v38 = vld [vmem:[%s1 + $0x50] sm:$0xff]
    %v39 = vld [vmem:[%s1 + $0x58] sm:$0xff]
    %v40 = vld [vmem:[%s1 + $0x60] sm:$0xff]
    %v41 = vld [vmem:[%s1 + $0x68] sm:$0xff]
    %v42 = vld [vmem:[%s1 + $0x70] sm:$0xff]
    %v43 = vld [vmem:[%s1 + $0x78] sm:$0xff]
    %v44 = vld [vmem:[%s1 + $0x80] sm:$0xff]
    %v45 = vld [vmem:[%s1 + $0x88] sm:$0xff]
    %v46 = vld [vmem:[%s1 + $0x90] sm:$0xff]
    %v47 = vld [vmem:[%s1 + $0x98] sm:$0xff]
    %v48 = vld [vmem:[%s1 + $0xa0] sm:$0xff]
    %v49 = vld [vmem:[%s1 + $0xa8] sm:$0xff]
    %v50 = vld [vmem:[%s1 + $0xb0] sm:$0xff]
    %v51 = vld [vmem:[%s1 + $0xb8] sm:$0xff]
    %v52 = vld [vmem:[%s1 + $0xc0] sm:$0xff]
    %v53 = vld [vmem:[%s1 + $0xc8] sm:$0xff]
    %v54 = vld [vmem:[%s1 + $0xd0] sm:$0xff]
    %v55 = vld [vmem:[%s1 + $0xd8] sm:$0xff]
    %v56 = vld [vmem:[%s1 + $0xe0] sm:$0xff]
    %v57 = vld [vmem:[%s1 + $0xe8] sm:$0xff]
    %v58 = vld [vmem:[%s1 + $0xf0] sm:$0xff]
    %v59 = vld [vmem:[%s1 + $0xf8] sm:$0xff]
    %v60 = vld [vmem:[%s2] sm:$0x3]
    %v62 = vlaneseq
    %v63 = vshrl.u32 %v62, 7
    %v64 = vsub.s32 0, %v63
    %v65 = vrot.slane %v60, %v64
    %v66 = vlaneseq
    %v67 = vshrl.u32 %v66, 7
    %v68 = vsub.s32 1, %v67
    %v69 = vrot.slane %v60, %v68
    %72 = vmatprep.subr.mxu0 %v29
    %73 = vmatpush1.msra.mxu0 %v28
    %74 = vmatprep.subr.mxu0 %v31
    %75 = vmatpush1.msra.mxu0 %v30
    %76 = vmatprep.subr.mxu0 %v33
    %77 = vmatpush1.msra.mxu0 %v32
    %78 = vmatprep.subr.mxu0 %v35
    %79 = vmatpush1.msra.mxu0 %v34
    %80 = vmatprep.subr.mxu0 %v37
    %81 = vmatpush1.msra.mxu0 %v36
    %82 = vmatprep.subr.mxu0 %v39
    %83 = vmatpush1.msra.mxu0 %v38
    %84 = vmatprep.subr.mxu0 %v41
    %85 = vmatpush1.msra.mxu0 %v40
    %86 = vmatprep.subr.mxu0 %v43
    %87 = vmatpush1.msra.mxu0 %v42
    %88 = vmatprep.subr.mxu0 %v45
    %89 = vmatpush1.msra.mxu0 %v44
    %90 = vmatprep.subr.mxu0 %v47
    %91 = vmatpush1.msra.mxu0 %v46
    %92 = vmatprep.subr.mxu0 %v49
    %93 = vmatpush1.msra.mxu0 %v48
    %94 = vmatprep.subr.mxu0 %v51
    %95 = vmatpush1.msra.mxu0 %v50
    %96 = vmatprep.subr.mxu0 %v53
    %97 = vmatpush1.msra.mxu0 %v52
    %98 = vmatprep.subr.mxu0 %v55
    %99 = vmatpush1.msra.mxu0 %v54
    %100 = vmatprep.subr.mxu0 %v57
    %101 = vmatpush1.msra.mxu0 %v56
    %102 = vmatprep.subr.mxu0 %v59
    %103 = vmatpush1.msra.mxu0 %v58
    %104 = vmatprep.subr.mxu0 0.0
    %105 = vmatpush1.msra.mxu0 0.0
    %106 = vmatprep.subr.mxu0 0.0
    %107 = vmatpush1.msra.mxu0 0.0
    %108 = vmatprep.subr.mxu0 0.0
    %109 = vmatpush1.msra.mxu0 0.0
    %110 = vmatprep.subr.mxu0 0.0
    %111 = vmatpush1.msra.mxu0 0.0
    %112 = vmatprep.subr.mxu0 0.0
    %113 = vmatpush1.msra.mxu0 0.0
    %114 = vmatprep.subr.mxu0 0.0
    %115 = vmatpush1.msra.mxu0 0.0
    %116 = vmatprep.subr.mxu0 0.0
    %117 = vmatpush1.msra.mxu0 0.0
    %118 = vmatprep.subr.mxu0 0.0
    %119 = vmatpush1.msra.mxu0 0.0
    %120 = vmatprep.subr.mxu0 0.0
    %121 = vmatpush1.msra.mxu0 0.0
    %122 = vmatprep.subr.mxu0 0.0
    %123 = vmatpush1.msra.mxu0 0.0
    %124 = vmatprep.subr.mxu0 0.0
    %125 = vmatpush1.msra.mxu0 0.0
    %126 = vmatprep.subr.mxu0 0.0
    %127 = vmatpush1.msra.mxu0 0.0
    %128 = vmatprep.subr.mxu0 0.0
    %129 = vmatpush1.msra.mxu0 0.0
    %130 = vmatprep.subr.mxu0 0.0
    %131 = vmatpush1.msra.mxu0 0.0
    %132 = vmatprep.subr.mxu0 0.0
    %133 = vmatpush1.msra.mxu0 0.0
    %134 = vmatprep.subr.mxu0 0.0
    %135 = vmatpush1.msra.mxu0 0.0
    %136 = vmatprep.mubr.f32.mxu0 0.0
    %137 = vmatmul.mubr.f32.gmra.mrb[0].mxu0 %v27
    %v138 = vpop.f32.mrb[0].mxu0
    %v139 = vadd.f32 %v65, %v138
    %v140 = vpop.f32.mrb[0].mxu0
    %v141 = vadd.f32 %v69, %v140
    %142 = vdwg.mxu0
    %v143 = vmax.f32 %v139, 0.0
    %v144 = vmax.f32 %v141, 0.0
    %v145 = vld [vmem:[%s3] sm:$0xff]
    %v146 = vld [vmem:[%s3 + $0x8] sm:$0xff]
    %v147 = vld [vmem:[%s3 + $0x10] sm:$0xff]
    %v148 = vld [vmem:[%s3 + $0x18] sm:$0xff]
    %v149 = vld [vmem:[%s3 + $0x20] sm:$0xff]
    %v150 = vld [vmem:[%s3 + $0x28] sm:$0xff]
    %v151 = vld [vmem:[%s3 + $0x30] sm:$0xff]
    %v152 = vld [vmem:[%s3 + $0x38] sm:$0xff]
    %v153 = vld [vmem:[%s3 + $0x40] sm:$0xff]
    %v154 = vld [vmem:[%s3 + $0x48] sm:$0xff]
    %v155 = vld [vmem:[%s3 + $0x50] sm:$0xff]
    %v156 = vld [vmem:[%s3 + $0x58] sm:$0xff]
    %v157 = vld [vmem:[%s3 + $0x60] sm:$0xff]
    %v158 = vld [vmem:[%s3 + $0x68] sm:$0xff]
    %v159 = vld [vmem:[%s3 + $0x70] sm:$0xff]
    %v160 = vld [vmem:[%s3 + $0x78] sm:$0xff]
    %v161 = vld [vmem:[%s3 + $0x80] sm:$0xff]
    %v162 = vld [vmem:[%s3 + $0x88] sm:$0xff]
    %v163 = vld [vmem:[%s3 + $0x90] sm:$0xff]
    %v164 = vld [vmem:[%s3 + $0x98] sm:$0xff]
    %v165 = vld [vmem:[%s3 + $0xa0] sm:$0xff]
    %v166 = vld [vmem:[%s3 + $0xa8] sm:$0xff]
    %v167 = vld [vmem:[%s3 + $0xb0] sm:$0xff]
    %v168 = vld [vmem:[%s3 + $0xb8] sm:$0xff]
    %v169 = vld [vmem:[%s3 + $0xc0] sm:$0xff]
    %v170 = vld [vmem:[%s3 + $0xc8] sm:$0xff]
    %v171 = vld [vmem:[%s3 + $0xd0] sm:$0xff]
    %v172 = vld [vmem:[%s3 + $0xd8] sm:$0xff]
    %v173 = vld [vmem:[%s3 + $0xe0] sm:$0xff]
    %v174 = vld [vmem:[%s3 + $0xe8] sm:$0xff]
    %v175 = vld [vmem:[%s3 + $0xf0] sm:$0xff]
    %v176 = vld [vmem:[%s3 + $0xf8] sm:$0xff]
    %v177 = vld [vmem:[%s4] sm:$0x1]
    %v179 = vlaneseq
    %v180 = vshrl.u32 %v179, 7
    %v181 = vsub.s32 0, %v180
    %v182 = vrot.slane %v177, %v181
    %184 = vmatprep.subr.mxu0 0.0
    %185 = vmatpush1.msra.mxu0 %v145
    %186 = vmatprep.subr.mxu0 0.0
    %187 = vmatpush1.msra.mxu0 %v146
    %188 = vmatprep.subr.mxu0 0.0
    %189 = vmatpush1.msra.mxu0 %v147
    %190 = vmatprep.subr.mxu0 0.0
    %191 = vmatpush1.msra.mxu0 %v148
    %192 = vmatprep.subr.mxu0 0.0
    %193 = vmatpush1.msra.mxu0 %v149
    %194 = vmatprep.subr.mxu0 0.0
    %195 = vmatpush1.msra.mxu0 %v150
    %196 = vmatprep.subr.mxu0 0.0
    %197 = vmatpush1.msra.mxu0 %v151
    %198 = vmatprep.subr.mxu0 0.0
    %199 = vmatpush1.msra.mxu0 %v152
    %200 = vmatprep.subr.mxu0 0.0
    %201 = vmatpush1.msra.mxu0 %v153
    %202 = vmatprep.subr.mxu0 0.0
    %203 = vmatpush1.msra.mxu0 %v154
    %204 = vmatprep.subr.mxu0 0.0
    %205 = vmatpush1.msra.mxu0 %v155
    %206 = vmatprep.subr.mxu0 0.0
    %207 = vmatpush1.msra.mxu0 %v156
    %208 = vmatprep.subr.mxu0 0.0
    %209 = vmatpush1.msra.mxu0 %v157
    %210 = vmatprep.subr.mxu0 0.0
    %211 = vmatpush1.msra.mxu0 %v158
    %212 = vmatprep.subr.mxu0 0.0
    %213 = vmatpush1.msra.mxu0 %v159
    %214 = vmatprep.subr.mxu0 0.0
    %215 = vmatpush1.msra.mxu0 %v160
    %216 = vmatprep.subr.mxu0 0.0
    %217 = vmatpush1.msra.mxu0 %v161
    %218 = vmatprep.subr.mxu0 0.0
    %219 = vmatpush1.msra.mxu0 %v162
    %220 = vmatprep.subr.mxu0 0.0
    %221 = vmatpush1.msra.mxu0 %v163
    %222 = vmatprep.subr.mxu0 0.0
    %223 = vmatpush1.msra.mxu0 %v164
    %224 = vmatprep.subr.mxu0 0.0
    %225 = vmatpush1.msra.mxu0 %v165
    %226 = vmatprep.subr.mxu0 0.0
    %227 = vmatpush1.msra.mxu0 %v166
    %228 = vmatprep.subr.mxu0 0.0
    %229 = vmatpush1.msra.mxu0 %v167
    %230 = vmatprep.subr.mxu0 0.0
    %231 = vmatpush1.msra.mxu0 %v168
    %232 = vmatprep.subr.mxu0 0.0
    %233 = vmatpush1.msra.mxu0 %v169
    %234 = vmatprep.subr.mxu0 0.0
    %235 = vmatpush1.msra.mxu0 %v170
    %236 = vmatprep.subr.mxu0 0.0
    %237 = vmatpush1.msra.mxu0 %v171
    %238 = vmatprep.subr.mxu0 0.0
    %239 = vmatpush1.msra.mxu0 %v172
    %240 = vmatprep.subr.mxu0 0.0
    %241 = vmatpush1.msra.mxu0 %v173
    %242 = vmatprep.subr.mxu0 0.0
    %243 = vmatpush1.msra.mxu0 %v174
    %244 = vmatprep.subr.mxu0 0.0
    %245 = vmatpush1.msra.mxu0 %v175
    %246 = vmatprep.subr.mxu0 0.0
    %247 = vmatpush1.msra.mxu0 %v176
    %248 = vmatprep.mubr.f32.mxu0 %v144
    %249 = vmatmul.mubr.f32.gmra.mrb[0].mxu0 %v143
    %v250 = vpop.f32.mrb[0].mxu0
    %v251 = vadd.f32 %v182, %v250
    %v252 = vpop.f32.mrb[0].mxu0
    %253 = vdwg.mxu0
    %v254 = vmax.f32 %v251, 0.0
    %v255 = vld [vmem:[%s5] sm:$0xff]
    %v256 = vld [vmem:[%s5 + $0x8] sm:$0xff]
    %v257 = vld [vmem:[%s5 + $0x10] sm:$0xff]
    %v258 = vld [vmem:[%s5 + $0x18] sm:$0xff]
    %v259 = vld [vmem:[%s5 + $0x20] sm:$0xff]
    %v260 = vld [vmem:[%s5 + $0x28] sm:$0xff]
    %v261 = vld [vmem:[%s5 + $0x30] sm:$0xff]
    %v262 = vld [vmem:[%s5 + $0x38] sm:$0xff]
    %v263 = vld [vmem:[%s5 + $0x40] sm:$0xff]
    %v264 = vld [vmem:[%s5 + $0x48] sm:$0xff]
    %v265 = vld [vmem:[%s5 + $0x50] sm:$0xff]
    %v266 = vld [vmem:[%s5 + $0x58] sm:$0xff]
    %v267 = vld [vmem:[%s5 + $0x60] sm:$0xff]
    %v268 = vld [vmem:[%s5 + $0x68] sm:$0xff]
    %v269 = vld [vmem:[%s5 + $0x70] sm:$0xff]
    %v270 = vld [vmem:[%s5 + $0x78] sm:$0xff]
    %v271 = vld [vmem:[%s6] sm:$0x1]
    %v273 = vlaneseq
    %v274 = vshrl.u32 %v273, 7
    %v275 = vsub.s32 0, %v274
    %v276 = vrot.slane %v271, %v275
    %278 = vmatprep.subr.mxu0 0.0
    %279 = vmatpush1.msra.mxu0 %v255
    %280 = vmatprep.subr.mxu0 0.0
    %281 = vmatpush1.msra.mxu0 %v256
    %282 = vmatprep.subr.mxu0 0.0
    %283 = vmatpush1.msra.mxu0 %v257
    %284 = vmatprep.subr.mxu0 0.0
    %285 = vmatpush1.msra.mxu0 %v258
    %286 = vmatprep.subr.mxu0 0.0
    %287 = vmatpush1.msra.mxu0 %v259
    %288 = vmatprep.subr.mxu0 0.0
    %289 = vmatpush1.msra.mxu0 %v260
    %290 = vmatprep.subr.mxu0 0.0
    %291 = vmatpush1.msra.mxu0 %v261
    %292 = vmatprep.subr.mxu0 0.0
    %293 = vmatpush1.msra.mxu0 %v262
    %294 = vmatprep.subr.mxu0 0.0
    %295 = vmatpush1.msra.mxu0 %v263
    %296 = vmatprep.subr.mxu0 0.0
    %297 = vmatpush1.msra.mxu0 %v264
    %298 = vmatprep.subr.mxu0 0.0
    %299 = vmatpush1.msra.mxu0 %v265
    %300 = vmatprep.subr.mxu0 0.0
    %301 = vmatpush1.msra.mxu0 %v266
    %302 = vmatprep.subr.mxu0 0.0
    %303 = vmatpush1.msra.mxu0 %v267
    %304 = vmatprep.subr.mxu0 0.0
    %305 = vmatpush1.msra.mxu0 %v268
    %306 = vmatprep.subr.mxu0 0.0
    %307 = vmatpush1.msra.mxu0 %v269
    %308 = vmatprep.subr.mxu0 0.0
    %309 = vmatpush1.msra.mxu0 %v270
    %310 = vmatprep.subr.mxu0 0.0
    %311 = vmatpush1.msra.mxu0 0.0
    %312 = vmatprep.subr.mxu0 0.0
    %313 = vmatpush1.msra.mxu0 0.0
    %314 = vmatprep.subr.mxu0 0.0
    %315 = vmatpush1.msra.mxu0 0.0
    %316 = vmatprep.subr.mxu0 0.0
    %317 = vmatpush1.msra.mxu0 0.0
    %318 = vmatprep.subr.mxu0 0.0
    %319 = vmatpush1.msra.mxu0 0.0
    %320 = vmatprep.subr.mxu0 0.0
    %321 = vmatpush1.msra.mxu0 0.0
    %322 = vmatprep.subr.mxu0 0.0
    %323 = vmatpush1.msra.mxu0 0.0
    %324 = vmatprep.subr.mxu0 0.0
    %325 = vmatpush1.msra.mxu0 0.0
    %326 = vmatprep.subr.mxu0 0.0
    %327 = vmatpush1.msra.mxu0 0.0
    %328 = vmatprep.subr.mxu0 0.0
    %329 = vmatpush1.msra.mxu0 0.0
    %330 = vmatprep.subr.mxu0 0.0
    %331 = vmatpush1.msra.mxu0 0.0
    %332 = vmatprep.subr.mxu0 0.0
    %333 = vmatpush1.msra.mxu0 0.0
    %334 = vmatprep.subr.mxu0 0.0
    %335 = vmatpush1.msra.mxu0 0.0
    %336 = vmatprep.subr.mxu0 0.0
    %337 = vmatpush1.msra.mxu0 0.0
    %338 = vmatprep.subr.mxu0 0.0
    %339 = vmatpush1.msra.mxu0 0.0
    %340 = vmatprep.subr.mxu0 0.0
    %341 = vmatpush1.msra.mxu0 0.0
    %342 = vmatprep.mubr.f32.mxu0 0.0
    %343 = vmatmul.mubr.f32.gmra.mrb[0].mxu0 %v254
    %v344 = vpop.f32.mrb[0].mxu0
    %v345 = vadd.f32 %v276, %v344
    %v346 = vpop.f32.mrb[0].mxu0
    %347 = vdwg.mxu0
    %348 = vst [vmem:[#allocation2] sm:$0xff] %v345
    // Predicated region
    $region30: #{static_gesture_forward.1} parent=1 // pred_check
      _
    $region31: #{static_gesture_forward.1} parent=1 // pred_check_branch
      %350 = sbr.rel (0) target = $region33
    $region32: #{static_gesture_forward.1} parent=1 // pred_region
      %s352 = ssub.s32 128, 128
      %353 = vsyncadd [#allocation3], %s352
      %s355 = sshll.u32 [#allocation2], 4
      %s356 = int_to_ptr.vmem [resolvable:$true] %s355
      %358 = dma.vmem_to_hbm [thread:$0]  %s356, 128, %s7, [#allocation3]
    $region33: #{static_gesture_forward.1} parent=1 // pred_fallthru
      _
    // Predicated region
    $region34: #{static_gesture_forward.1} parent=1 // pred_check
      _
    $region35: #{static_gesture_forward.1} parent=1 // pred_check_branch
      %360 = sbr.rel (0) target = $region37
    $region36: #{static_gesture_forward.1} parent=1 // pred_region
      %361 = dma.done [#allocation3], 128
    $region37: #{static_gesture_forward.1} parent=1 // pred_fallthru
      _
    %362 = vsyncpa [#allocation3], 1

</llo_original>
